<compile_context>
chip_gen: v5e
topology: v5e:2x2
jax: 0.10.0
libtpu: 0.0.40
codegen_flags: <defaults>
</compile_context>

<pallas_src>
import functools

import jax
import jax.numpy as jnp
from jax import lax
from jax.experimental import pallas as pl
from jax.experimental.pallas import tpu as pltpu

# ----------------------------- configuration -----------------------------
B = 2            # batch
SRC_LEN = 8      # source sequence length
TGT_LEN = 8      # target sequence length
BERT_LEN = 8     # bert input sequence length
D = 128          # embed / hidden dim (lane aligned)
VOCAB = 128      # output vocabulary (lane aligned)

PAD_ID = 0
CLS_ID = 1
SEP_ID = 2

MASK_CLS_SEP = True      # self.mask_cls_sep
BERT_OUTPUT_LAYER = -1   # self.bert_output_layer (single synthetic layer here)

NEG_INF = -1e30


# ------------------------------ Pallas kernel ------------------------------
def _fused_encdec_kernel(
    src_emb_ref,    # (B*SRC_LEN, D)        bf16  flattened source embeddings
    bert_emb_ref,   # (B*BERT_LEN, D)       bf16  flattened bert embeddings
    tgt_emb_ref,    # (B*TGT_LEN, D)        bf16  flattened target embeddings
    src_mask_ref,   # (B*TGT_LEN, B*SRC_LEN)  f32 block-diag additive mask
    bert_mask_ref,  # (B*TGT_LEN, B*BERT_LEN) f32 block-diag additive mask
    w_enc_ref,      # (D, D)                bf16  encoder projection
    w_bert_ref,     # (D, D)                bf16  bert "encoder layer" projection
    w_q_ref,        # (D, D)                bf16  decoder query projection
    w_out_ref,      # (D, VOCAB)            bf16  decoder output_layer projection
    logits_ref,     # (B*TGT_LEN, VOCAB)    f32   output
):
    f32 = jnp.float32
    bf16 = jnp.bfloat16

    # --- encoder: encoder_out = src_emb @ W_enc  (bf16 MXU, f32 acc) ---
    enc_h = jnp.dot(src_emb_ref[...], w_enc_ref[...], preferred_element_type=f32)

    # --- bert encoder (synthetic single layer == layer[bert_output_layer]) ---
    bert_h = jnp.dot(bert_emb_ref[...], w_bert_ref[...], preferred_element_type=f32)

    # --- decoder ---
    tgt_bf = tgt_emb_ref[...]
    tgt = tgt_bf.astype(f32)
    q = jnp.dot(tgt_bf, w_q_ref[...], preferred_element_type=f32)     # (BT, D) f32

    scale = f32(1.0 / (float(D) ** 0.5))
    enc_h_bf = enc_h.astype(bf16)
    bert_h_bf = bert_h.astype(bf16)
    q_bf = q.astype(bf16)

    # contract axis 1 of both operands: q @ enc_h^T without an XLU transpose
    dn = (((1,), (1,)), ((), ()))

    # cross-attention over encoder_out (block-diag mask handles batch + padding)
    s1 = lax.dot_general(q_bf, enc_h_bf, dn, preferred_element_type=f32) * scale
    s1 = s1 + src_mask_ref[...]                                        # (BT, BS)
    m1 = jnp.max(s1, axis=-1, keepdims=True)
    e1 = jnp.exp(s1 - m1)
    p1 = e1 * pl.reciprocal(jnp.sum(e1, axis=-1, keepdims=True), approx=True)
    ctx1 = jnp.dot(p1.astype(bf16), enc_h_bf, preferred_element_type=f32)

    # cross-attention over bert_encoder_out (mask includes cls/sep positions
    # when mask_cls_sep is set)
    s2 = lax.dot_general(q_bf, bert_h_bf, dn, preferred_element_type=f32) * scale
    s2 = s2 + bert_mask_ref[...]                                       # (BT, BSb)
    m2 = jnp.max(s2, axis=-1, keepdims=True)
    e2 = jnp.exp(s2 - m2)
    p2 = e2 * pl.reciprocal(jnp.sum(e2, axis=-1, keepdims=True), approx=True)
    ctx2 = jnp.dot(p2.astype(bf16), bert_h_bf, preferred_element_type=f32)

    # decoder features -> output_layer projection to vocab
    feat = tgt + ctx1 + ctx2                                           # (BT, D) f32
    logits_ref[...] = jnp.dot(feat.astype(bf16), w_out_ref[...],
                              preferred_element_type=f32)


@jax.jit
def _run_pallas(src_emb, bert_emb, tgt_emb, src_mask, bert_mask,
                w_enc, w_bert, w_q, w_out):
    vmem = pltpu.MemorySpace.VMEM
    return pl.pallas_call(
        _fused_encdec_kernel,
        out_shape=jax.ShapeDtypeStruct((B * TGT_LEN, VOCAB), jnp.float32),
        in_specs=[pl.BlockSpec(memory_space=vmem)] * 9,
        out_specs=pl.BlockSpec(memory_space=vmem),
    )(src_emb, bert_emb, tgt_emb, src_mask, bert_mask,
      w_enc, w_bert, w_q, w_out)


# ------------------------------ model wrapper ------------------------------
def _block_diag_additive_mask(pad_bool, tgt_len):
    """Build (B*tgt_len, B*src_len) additive mask.

    Row r (belonging to batch b) may attend to column c only if c belongs to
    the same batch element and is not a padded/masked position; otherwise the
    additive mask is -inf.  This is what lets the flattened single-invocation
    kernel stay semantically identical to per-batch attention.
    """
    bsz, src_len = pad_bool.shape
    row_batch = jnp.repeat(jnp.arange(bsz), tgt_len)          # (B*T,)
    col_batch = jnp.repeat(jnp.arange(bsz), src_len)          # (B*S,)
    same = row_batch[:, None] == col_batch[None, :]           # (B*T, B*S)
    ok = same & jnp.logical_not(pad_bool.reshape(-1))[None, :]
    return jnp.where(ok, 0.0, NEG_INF).astype(jnp.float32)


class FairseqEncoderDecoderModelPallas:
    """Synthetic encoder-decoder model mirroring the fairseq forward() flow."""

    def __init__(self, key, mask_cls_sep=MASK_CLS_SEP,
                 bert_output_layer=BERT_OUTPUT_LAYER):
        self.mask_cls_sep = mask_cls_sep
        self.bert_output_layer = bert_output_layer
        ks = jax.random.split(key, 6)
        scale = 1.0 / jnp.sqrt(jnp.float32(D))
        bf16 = jnp.bfloat16
        # deterministic parameter init (synthetic; no checkpoint load)
        self.src_embed = (jax.random.normal(ks[0], (VOCAB, D), jnp.float32)
                          * 0.02).astype(bf16)
        self.bert_embed = (jax.random.normal(ks[1], (VOCAB, D), jnp.float32)
                           * 0.02).astype(bf16)
        self.tgt_embed = (jax.random.normal(ks[2], (VOCAB, D), jnp.float32)
                          * 0.02).astype(bf16)
        self.w_enc = (jax.random.normal(ks[3], (D, D), jnp.float32)
                      * scale).astype(bf16)
        self.w_bert = (jax.random.normal(ks[4], (D, D), jnp.float32)
                       * scale).astype(bf16)
        self.w_q = (jax.random.normal(ks[5], (D, D), jnp.float32)
                    * scale).astype(bf16)
        self.w_out = (jax.random.normal(jax.random.PRNGKey(42), (D, VOCAB),
                                        jnp.float32) * scale).astype(bf16)

    def forward(self, src_tokens, src_lengths, prev_output_tokens, bert_input):
        # ----- glue: embedding lookups (gather) and mask construction -----
        src_emb = jnp.take(self.src_embed, src_tokens, axis=0)          # (B,S,D) bf16
        bert_emb = jnp.take(self.bert_embed, bert_input, axis=0)        # (B,Sb,D) bf16
        tgt_emb = jnp.take(self.tgt_embed, prev_output_tokens, axis=0)  # (B,T,D) bf16

        # encoder padding mask from src_lengths (positions >= length are pad)
        pos = jnp.arange(SRC_LEN)[None, :]                              # (1, S)
        src_pad = pos >= src_lengths[:, None]                           # (B, S) bool

        # bert_encoder_padding_mask = bert_input.eq(pad) (+ cls + sep)
        bert_pad = bert_input == PAD_ID
        if self.mask_cls_sep:
            bert_pad = bert_pad | (bert_input == CLS_ID) | (bert_input == SEP_ID)

        # block-diagonal additive masks: batch isolation + padding in one tensor
        src_mask = _block_diag_additive_mask(src_pad, TGT_LEN)    # (B*T, B*S)
        bert_mask = _block_diag_additive_mask(bert_pad, TGT_LEN)  # (B*T, B*Sb)

        # NOTE: the reference does bert_encoder_out.permute(1, 0, 2) — a pure
        # layout change to (T, B, D); the flattened (rows, D) kernel layout
        # makes the permute semantically a no-op here.

        # ----- hot path: single fused Pallas invocation on flattened rows -----
        logits_flat = _run_pallas(
            src_emb.reshape(B * SRC_LEN, D),
            bert_emb.reshape(B * BERT_LEN, D),
            tgt_emb.reshape(B * TGT_LEN, D),
            src_mask, bert_mask,
            self.w_enc, self.w_bert, self.w_q, self.w_out)
        logits = logits_flat.reshape(B, TGT_LEN, VOCAB)

        extra = {"bert_encoder_padding_mask": bert_pad}
        return logits, extra

    def get_normalized_probs(self, net_output, log_probs):
        logits = net_output[0].astype(jnp.float32)
        if log_probs:
            return jax.nn.log_softmax(logits, axis=-1)
        return jax.nn.softmax(logits, axis=-1)


# --------------------------------- main ---------------------------------
if __name__ == "__main__":
    key = jax.random.PRNGKey(0)
    k_model, k_src, k_tgt, k_bert = jax.random.split(key, 4)

    model = FairseqEncoderDecoderModelPallas(k_model)

    # deterministic example inputs (LongTensor semantics -> int32 token ids)
    src_tokens = jax.random.randint(k_src, (B, SRC_LEN), 3, VOCAB, jnp.int32)
    src_lengths = jnp.array([SRC_LEN, SRC_LEN - 2], dtype=jnp.int32)
    prev_output_tokens = jax.random.randint(k_tgt, (B, TGT_LEN), 3, VOCAB, jnp.int32)
    bert_input = jax.random.randint(k_bert, (B, BERT_LEN), 3, VOCAB, jnp.int32)
    # put cls / sep / pad tokens into bert_input to exercise mask_cls_sep
    bert_input = bert_input.at[:, 0].set(CLS_ID)
    bert_input = bert_input.at[:, BERT_LEN - 2].set(SEP_ID)
    bert_input = bert_input.at[:, BERT_LEN - 1].set(PAD_ID)

    logits, extra = model.forward(src_tokens, src_lengths,
                                  prev_output_tokens, bert_input)
    logits = jax.block_until_ready(logits)

    assert logits.shape == (B, TGT_LEN, VOCAB), logits.shape
    assert logits.dtype == jnp.float32
    assert bool(jnp.all(jnp.isfinite(logits)))

    # sanity: probabilities normalize
    probs = jax.block_until_ready(model.get_normalized_probs((logits,), False))
    assert bool(jnp.allclose(jnp.sum(probs, axis=-1), 1.0, atol=1e-4))

    print("KERNEL_OK")
</pallas_src>

<mosaic_0001>
module attributes {stable_mosaic.version = 11 : i64} {
  func.func @_fused_encdec_kernel(%arg0: memref<16x128xbf16, #tpu.memory_space<vmem>>, %arg1: memref<16x128xbf16, #tpu.memory_space<vmem>>, %arg2: memref<16x128xbf16, #tpu.memory_space<vmem>>, %arg3: memref<16x16xf32, #tpu.memory_space<vmem>>, %arg4: memref<16x16xf32, #tpu.memory_space<vmem>>, %arg5: memref<128x128xbf16, #tpu.memory_space<vmem>>, %arg6: memref<128x128xbf16, #tpu.memory_space<vmem>>, %arg7: memref<128x128xbf16, #tpu.memory_space<vmem>>, %arg8: memref<128x128xbf16, #tpu.memory_space<vmem>>, %arg9: memref<16x128xf32, #tpu.memory_space<vmem>>) attributes {dimension_semantics = [], scalar_prefetch = 0 : i64, scratch_operands = 0 : i64, tpu.core_type = #tpu.core_type<tc>} {
    %c0 = arith.constant 0 : index
    %c0_0 = arith.constant 0 : index
    %0 = vector.load %arg0[%c0, %c0_0] : memref<16x128xbf16, #tpu.memory_space<vmem>>, vector<16x128xbf16>
    %c0_1 = arith.constant 0 : index
    %c0_2 = arith.constant 0 : index
    %1 = vector.load %arg5[%c0_1, %c0_2] : memref<128x128xbf16, #tpu.memory_space<vmem>>, vector<128x128xbf16>
    %cst = arith.constant dense<0.000000e+00> : vector<16x128xf32>
    %2 = tpu.matmul %0, %1, %cst {dimension_numbers = #tpu.dot_dimension_numbers<[1], [0], [0], [1], [0, 0, 1, 1], [], []>} : vector<16x128xbf16>, vector<128x128xbf16>, vector<16x128xf32> -> vector<16x128xf32>
    %c0_3 = arith.constant 0 : index
    %c0_4 = arith.constant 0 : index
    %3 = vector.load %arg1[%c0_3, %c0_4] : memref<16x128xbf16, #tpu.memory_space<vmem>>, vector<16x128xbf16>
    %c0_5 = arith.constant 0 : index
    %c0_6 = arith.constant 0 : index
    %4 = vector.load %arg6[%c0_5, %c0_6] : memref<128x128xbf16, #tpu.memory_space<vmem>>, vector<128x128xbf16>
    %cst_7 = arith.constant dense<0.000000e+00> : vector<16x128xf32>
    %5 = tpu.matmul %3, %4, %cst_7 {dimension_numbers = #tpu.dot_dimension_numbers<[1], [0], [0], [1], [0, 0, 1, 1], [], []>} : vector<16x128xbf16>, vector<128x128xbf16>, vector<16x128xf32> -> vector<16x128xf32>
    %c0_8 = arith.constant 0 : index
    %c0_9 = arith.constant 0 : index
    %6 = vector.load %arg2[%c0_8, %c0_9] : memref<16x128xbf16, #tpu.memory_space<vmem>>, vector<16x128xbf16>
    %7 = arith.extf %6 : vector<16x128xbf16> to vector<16x128xf32>
    %c0_10 = arith.constant 0 : index
    %c0_11 = arith.constant 0 : index
    %8 = vector.load %arg7[%c0_10, %c0_11] : memref<128x128xbf16, #tpu.memory_space<vmem>>, vector<128x128xbf16>
    %cst_12 = arith.constant dense<0.000000e+00> : vector<16x128xf32>
    %9 = tpu.matmul %6, %8, %cst_12 {dimension_numbers = #tpu.dot_dimension_numbers<[1], [0], [0], [1], [0, 0, 1, 1], [], []>} : vector<16x128xbf16>, vector<128x128xbf16>, vector<16x128xf32> -> vector<16x128xf32>
    %10 = arith.truncf %2 : vector<16x128xf32> to vector<16x128xbf16>
    %11 = arith.truncf %5 : vector<16x128xf32> to vector<16x128xbf16>
    %12 = arith.truncf %9 : vector<16x128xf32> to vector<16x128xbf16>
    %cst_13 = arith.constant dense<0.000000e+00> : vector<16x16xf32>
    %13 = tpu.matmul %12, %10, %cst_13 {dimension_numbers = #tpu.dot_dimension_numbers<[1], [1], [0], [0], [0, 0, 1, 0], [], []>} : vector<16x128xbf16>, vector<16x128xbf16>, vector<16x16xf32> -> vector<16x16xf32>
    %cst_14 = arith.constant 0.0883883461 : f32
    %14 = vector.broadcast %cst_14 : f32 to vector<16x16xf32>
    %15 = arith.mulf %13, %14 : vector<16x16xf32>
    %c0_15 = arith.constant 0 : index
    %c0_16 = arith.constant 0 : index
    %16 = vector.load %arg3[%c0_15, %c0_16] : memref<16x16xf32, #tpu.memory_space<vmem>>, vector<16x16xf32>
    %17 = arith.addf %15, %16 : vector<16x16xf32>
    %cst_17 = arith.constant dense<0xFF800000> : vector<16xf32>
    %18 = vector.multi_reduction <maximumf>, %17, %cst_17 [1] : vector<16x16xf32> to vector<16xf32>
    %19 = vector.shape_cast %18 : vector<16xf32> to vector<16x1xf32>
    %20 = vector.broadcast %19 : vector<16x1xf32> to vector<16x16xf32>
    %21 = arith.subf %17, %20 : vector<16x16xf32>
    %22 = math.exp %21 : vector<16x16xf32>
    %cst_18 = arith.constant dense<0.000000e+00> : vector<16xf32>
    %23 = vector.multi_reduction <add>, %22, %cst_18 [1] : vector<16x16xf32> to vector<16xf32>
    %24 = vector.shape_cast %23 : vector<16xf32> to vector<16x1xf32>
    %25 = tpu.reciprocal %24 {approx = true} : vector<16x1xf32> -> vector<16x1xf32>
    %26 = vector.broadcast %25 : vector<16x1xf32> to vector<16x16xf32>
    %27 = arith.mulf %22, %26 : vector<16x16xf32>
    %28 = arith.truncf %27 : vector<16x16xf32> to vector<16x16xbf16>
    %cst_19 = arith.constant dense<0.000000e+00> : vector<16x128xf32>
    %29 = tpu.matmul %28, %10, %cst_19 {dimension_numbers = #tpu.dot_dimension_numbers<[1], [0], [0], [1], [0, 0, 1, 1], [], []>} : vector<16x16xbf16>, vector<16x128xbf16>, vector<16x128xf32> -> vector<16x128xf32>
    %cst_20 = arith.constant dense<0.000000e+00> : vector<16x16xf32>
    %30 = tpu.matmul %12, %11, %cst_20 {dimension_numbers = #tpu.dot_dimension_numbers<[1], [1], [0], [0], [0, 0, 1, 0], [], []>} : vector<16x128xbf16>, vector<16x128xbf16>, vector<16x16xf32> -> vector<16x16xf32>
    %cst_21 = arith.constant 0.0883883461 : f32
    %31 = vector.broadcast %cst_21 : f32 to vector<16x16xf32>
    %32 = arith.mulf %30, %31 : vector<16x16xf32>
    %c0_22 = arith.constant 0 : index
    %c0_23 = arith.constant 0 : index
    %33 = vector.load %arg4[%c0_22, %c0_23] : memref<16x16xf32, #tpu.memory_space<vmem>>, vector<16x16xf32>
    %34 = arith.addf %32, %33 : vector<16x16xf32>
    %cst_24 = arith.constant dense<0xFF800000> : vector<16xf32>
    %35 = vector.multi_reduction <maximumf>, %34, %cst_24 [1] : vector<16x16xf32> to vector<16xf32>
    %36 = vector.shape_cast %35 : vector<16xf32> to vector<16x1xf32>
    %37 = vector.broadcast %36 : vector<16x1xf32> to vector<16x16xf32>
    %38 = arith.subf %34, %37 : vector<16x16xf32>
    %39 = math.exp %38 : vector<16x16xf32>
    %cst_25 = arith.constant dense<0.000000e+00> : vector<16xf32>
    %40 = vector.multi_reduction <add>, %39, %cst_25 [1] : vector<16x16xf32> to vector<16xf32>
    %41 = vector.shape_cast %40 : vector<16xf32> to vector<16x1xf32>
    %42 = tpu.reciprocal %41 {approx = true} : vector<16x1xf32> -> vector<16x1xf32>
    %43 = vector.broadcast %42 : vector<16x1xf32> to vector<16x16xf32>
    %44 = arith.mulf %39, %43 : vector<16x16xf32>
    %45 = arith.truncf %44 : vector<16x16xf32> to vector<16x16xbf16>
    %cst_26 = arith.constant dense<0.000000e+00> : vector<16x128xf32>
    %46 = tpu.matmul %45, %11, %cst_26 {dimension_numbers = #tpu.dot_dimension_numbers<[1], [0], [0], [1], [0, 0, 1, 1], [], []>} : vector<16x16xbf16>, vector<16x128xbf16>, vector<16x128xf32> -> vector<16x128xf32>
    %47 = arith.addf %7, %29 : vector<16x128xf32>
    %48 = arith.addf %47, %46 : vector<16x128xf32>
    %49 = arith.truncf %48 : vector<16x128xf32> to vector<16x128xbf16>
    %c0_27 = arith.constant 0 : index
    %c0_28 = arith.constant 0 : index
    %50 = vector.load %arg8[%c0_27, %c0_28] : memref<128x128xbf16, #tpu.memory_space<vmem>>, vector<128x128xbf16>
    %cst_29 = arith.constant dense<0.000000e+00> : vector<16x128xf32>
    %51 = tpu.matmul %49, %50, %cst_29 {dimension_numbers = #tpu.dot_dimension_numbers<[1], [0], [0], [1], [0, 0, 1, 1], [], []>} : vector<16x128xbf16>, vector<128x128xbf16>, vector<16x128xf32> -> vector<16x128xf32>
    %c0_30 = arith.constant 0 : index
    %c0_31 = arith.constant 0 : index
    %52 = vector.load %arg9[%c0_30, %c0_31] : memref<16x128xf32, #tpu.memory_space<vmem>>, vector<16x128xf32>
    tpu.vector_store %arg9[%c0_30, %c0_31], %51 {strides = array<i32>} : memref<16x128xf32, #tpu.memory_space<vmem>>, vector<16x128xf32>,
    return
  }
}

</mosaic_0001>

<llo_original>
// kernel: _run_pallas.1
$region0: #{_run_pallas.1}
  #allocation0 [shape = 'u32[]', space=smem, size = 0x4, offset = 0x4, fixed_abs, tag = 'smem constant byte address 0x4 - core index']
  #allocation1 [shape = 'u32[72,128]{1,0:T(1,128)}', space=vmem, size = 0x9000, scoped, tag = 'internal scratch']
  %s0 = inlined_call_operand.hbm [shape: bf16[16,128], index: 0, kind: input, shape index: {}]
  %s1 = inlined_call_operand.hbm [shape: bf16[16,128], index: 1, kind: input, shape index: {}]
  %s2 = inlined_call_operand.hbm [shape: bf16[16,128], index: 2, kind: input, shape index: {}]
  %s3 = inlined_call_operand.hbm [shape: f32[16,16], index: 3, kind: input, shape index: {}]
  %s4 = inlined_call_operand.hbm [shape: f32[16,16], index: 4, kind: input, shape index: {}]
  %s5 = inlined_call_operand.hbm [shape: bf16[128,128], index: 5, kind: input, shape index: {}]
  %s6 = inlined_call_operand.hbm [shape: bf16[128,128], index: 6, kind: input, shape index: {}]
  %s7 = inlined_call_operand.hbm [shape: bf16[128,128], index: 7, kind: input, shape index: {}]
  %s8 = inlined_call_operand.hbm [shape: bf16[128,128], index: 8, kind: input, shape index: {}]
  %s9 = inlined_call_operand.hbm [shape: f32[16,128], index: 9, kind: output, shape index: {}]
  %s10 = sld [smem:[#allocation0]]
  $region82: #{_run_pallas.1} parent=0
    _
  %s12 = ssub.s32 1, %s10
  %s13 = scalar_select 0, %s12, %s10
  $region1: #{_run_pallas.1} parent=0
    #allocation2 [shape = 'u8[4096]{0}', space=vmem, size = 0x1000, scoped, tag = 'input window, operand 0, single buffered']
    #allocation3 [shape = 's32[1]{0}', space=sflag, size = 0x4, scoped, tag = 'scoped memory for _run_pallas.1']
    #allocation4 [shape = 's32[1]{0}', space=sflag, size = 0x4, scoped, tag = 'scoped memory for _run_pallas.1']
    #allocation5 [shape = 'u8[4096]{0}', space=vmem, size = 0x1000, scoped, tag = 'input window, operand 1, single buffered']
    #allocation6 [shape = 's32[1]{0}', space=sflag, size = 0x4, scoped, tag = 'scoped memory for _run_pallas.1']
    #allocation7 [shape = 'u8[4096]{0}', space=vmem, size = 0x1000, scoped, tag = 'input window, operand 2, single buffered']
    #allocation8 [shape = 'u8[8192]{0}', space=vmem, size = 0x2000, scoped, tag = 'input window, operand 3, single buffered']
    #allocation9 [shape = 's32[1]{0}', space=sflag, size = 0x4, scoped, tag = 'scoped memory for _run_pallas.1']
    #allocation10 [shape = 'u8[8192]{0}', space=vmem, size = 0x2000, scoped, tag = 'input window, operand 4, single buffered']
    #allocation11 [shape = 'u8[32768]{0}', space=vmem, size = 0x8000, scoped, tag = 'input window, operand 5, single buffered']
    #allocation12 [shape = 's32[1]{0}', space=sflag, size = 0x4, scoped, tag = 'scoped memory for _run_pallas.1']
    #allocation13 [shape = 'u8[32768]{0}', space=vmem, size = 0x8000, scoped, tag = 'input window, operand 6, single buffered']
    #allocation14 [shape = 'u8[32768]{0}', space=vmem, size = 0x8000, scoped, tag = 'input window, operand 7, single buffered']
    #allocation15 [shape = 's32[1]{0}', space=sflag, size = 0x4, scoped, tag = 'scoped memory for _run_pallas.1']
    #allocation16 [shape = 'u8[32768]{0}', space=vmem, size = 0x8000, scoped, tag = 'input window, operand 8, single buffered']
    #allocation17 [shape = 'u8[8192]{0}', space=vmem, size = 0x2000, scoped, tag = 'output window, operand 0, single buffered']
    %14 = vsyncpa [#allocation3], 0
    %15 = vsyncpa [#allocation6], 0
    %16 = vsyncpa [#allocation9], 0
    %17 = vsyncpa [#allocation12], 0
    %18 = vsyncpa [#allocation15], 0
    %19 = vsyncpa [#allocation4], 0
    // Predicated region
    $region2: #{_run_pallas.1} parent=1 // pred_check
      _
    $region3: #{_run_pallas.1} parent=1 // pred_check_branch
      %21 = sbr.rel (0) target = $region5
    $region4: #{_run_pallas.1} parent=1 // pred_region
      %23 = vsyncadd [#allocation3], 0
      %s24 = sshll.u32 %s0, 4
      %s25 = int_to_ptr.hbm [resolvable:$true] %s24
      %s26 = sshll.u32 [#allocation2], 4
      %s27 = int_to_ptr.vmem [resolvable:$true] %s26
      %32 = dma.hbm_to_vmem [thread:$0]  %s25, 128, %s27, [#allocation3], 64, 64, 4
    $region5: #{_run_pallas.1} parent=1 // pred_fallthru
      _
    // Predicated region
    $region6: #{_run_pallas.1} parent=1 // pred_check
      _
    $region7: #{_run_pallas.1} parent=1 // pred_check_branch
      %34 = sbr.rel (0) target = $region9
    $region8: #{_run_pallas.1} parent=1 // pred_region
      %36 = vsyncadd [#allocation6], 0
      %s37 = sshll.u32 %s1, 4
      %s38 = int_to_ptr.hbm [resolvable:$true] %s37
      %s39 = sshll.u32 [#allocation5], 4
      %s40 = int_to_ptr.vmem [resolvable:$true] %s39
      %45 = dma.hbm_to_vmem [thread:$0]  %s38, 128, %s40, [#allocation6], 64, 64, 4
    $region9: #{_run_pallas.1} parent=1 // pred_fallthru
      _
    // Predicated region
    $region10: #{_run_pallas.1} parent=1 // pred_check
      _
    $region11: #{_run_pallas.1} parent=1 // pred_check_branch
      %47 = sbr.rel (0) target = $region13
    $region12: #{_run_pallas.1} parent=1 // pred_region
      %49 = vsyncadd [#allocation6], 0
      %s50 = sshll.u32 %s2, 4
      %s51 = int_to_ptr.hbm [resolvable:$true] %s50
      %s52 = sshll.u32 [#allocation7], 4
      %s53 = int_to_ptr.vmem [resolvable:$true] %s52
      %58 = dma.hbm_to_vmem [thread:$0]  %s51, 128, %s53, [#allocation6], 64, 64, 4
    $region13: #{_run_pallas.1} parent=1 // pred_fallthru
      _
    // Predicated region
    $region14: #{_run_pallas.1} parent=1 // pred_check
      _
    $region15: #{_run_pallas.1} parent=1 // pred_check_branch
      %60 = sbr.rel (0) target = $region17
    $region16: #{_run_pallas.1} parent=1 // pred_region
      %62 = vsyncadd [#allocation9], 0
      %s63 = sshll.u32 %s3, 4
      %s64 = int_to_ptr.hbm [resolvable:$true] %s63
      %s65 = sshll.u32 [#allocation8], 4
      %s66 = int_to_ptr.vmem [resolvable:$true] %s65
      %71 = dma.hbm_to_vmem [thread:$0]  %s64, 256, %s66, [#allocation9], 128, 128, 8
    $region17: #{_run_pallas.1} parent=1 // pred_fallthru
      _
    // Predicated region
    $region18: #{_run_pallas.1} parent=1 // pred_check
      _
    $region19: #{_run_pallas.1} parent=1 // pred_check_branch
      %73 = sbr.rel (0) target = $region21
    $region20: #{_run_pallas.1} parent=1 // pred_region
      %75 = vsyncadd [#allocation9], 0
      %s76 = sshll.u32 %s4, 4
      %s77 = int_to_ptr.hbm [resolvable:$true] %s76
      %s78 = sshll.u32 [#allocation10], 4
      %s79 = int_to_ptr.vmem [resolvable:$true] %s78
      %84 = dma.hbm_to_vmem [thread:$0]  %s77, 256, %s79, [#allocation9], 128, 128, 8
    $region21: #{_run_pallas.1} parent=1 // pred_fallthru
      _
    // Predicated region
    $region22: #{_run_pallas.1} parent=1 // pred_check
      _
    $region23: #{_run_pallas.1} parent=1 // pred_check_branch
      %86 = sbr.rel (0) target = $region25
    $region24: #{_run_pallas.1} parent=1 // pred_region
      %88 = vsyncadd [#allocation12], 0
      %s89 = sshll.u32 %s5, 4
      %s90 = int_to_ptr.hbm [resolvable:$true] %s89
      %s91 = sshll.u32 [#allocation11], 4
      %s92 = int_to_ptr.vmem [resolvable:$true] %s91
      %97 = dma.hbm_to_vmem [thread:$0]  %s90, 1024, %s92, [#allocation12], 64, 64, 4
    $region25: #{_run_pallas.1} parent=1 // pred_fallthru
      _
    // Predicated region
    $region26: #{_run_pallas.1} parent=1 // pred_check
      _
    $region27: #{_run_pallas.1} parent=1 // pred_check_branch
      %99 = sbr.rel (0) target = $region29
    $region28: #{_run_pallas.1} parent=1 // pred_region
      %101 = vsyncadd [#allocation12], 0
      %s102 = sshll.u32 %s6, 4
      %s103 = int_to_ptr.hbm [resolvable:$true] %s102
      %s104 = sshll.u32 [#allocation13], 4
      %s105 = int_to_ptr.vmem [resolvable:$true] %s104
      %110 = dma.hbm_to_vmem [thread:$0]  %s103, 1024, %s105, [#allocation12], 64, 64, 4
    $region29: #{_run_pallas.1} parent=1 // pred_fallthru
      _
    // Predicated region
    $region30: #{_run_pallas.1} parent=1 // pred_check
      _
    $region31: #{_run_pallas.1} parent=1 // pred_check_branch
      %112 = sbr.rel (0) target = $region33
    $region32: #{_run_pallas.1} parent=1 // pred_region
      %114 = vsyncadd [#allocation15], 0
      %s115 = sshll.u32 %s7, 4
      %s116 = int_to_ptr.hbm [resolvable:$true] %s115
      %s117 = sshll.u32 [#allocation14], 4
      %s118 = int_to_ptr.vmem [resolvable:$true] %s117
      %123 = dma.hbm_to_vmem [thread:$0]  %s116, 1024, %s118, [#allocation15], 64, 64, 4
    $region33: #{_run_pallas.1} parent=1 // pred_fallthru
      _
    // Predicated region
    $region34: #{_run_pallas.1} parent=1 // pred_check
      _
    $region35: #{_run_pallas.1} parent=1 // pred_check_branch
      %125 = sbr.rel (0) target = $region37
    $region36: #{_run_pallas.1} parent=1 // pred_region
      %127 = vsyncadd [#allocation15], 0
      %s128 = sshll.u32 %s8, 4
      %s129 = int_to_ptr.hbm [resolvable:$true] %s128
      %s130 = sshll.u32 [#allocation16], 4
      %s131 = int_to_ptr.vmem [resolvable:$true] %s130
      %136 = dma.hbm_to_vmem [thread:$0]  %s129, 1024, %s131, [#allocation15], 64, 64, 4
    $region37: #{_run_pallas.1} parent=1 // pred_fallthru
      _
    // Predicated region
    $region38: #{_run_pallas.1} parent=1 // pred_check
      _
    $region39: #{_run_pallas.1} parent=1 // pred_check_branch
      %138 = sbr.rel (0) target = $region41
    $region40: #{_run_pallas.1} parent=1 // pred_region
      %140 = dma.done [#allocation3], 128
    $region41: #{_run_pallas.1} parent=1 // pred_fallthru
      _
    // Predicated region
    $region42: #{_run_pallas.1} parent=1 // pred_check
      _
    $region43: #{_run_pallas.1} parent=1 // pred_check_branch
      %142 = sbr.rel (0) target = $region45
    $region44: #{_run_pallas.1} parent=1 // pred_region
      %144 = dma.done [#allocation6], 128
    $region45: #{_run_pallas.1} parent=1 // pred_fallthru
      _
    // Predicated region
    $region46: #{_run_pallas.1} parent=1 // pred_check
      _
    $region47: #{_run_pallas.1} parent=1 // pred_check_branch
      %146 = sbr.rel (0) target = $region49
    $region48: #{_run_pallas.1} parent=1 // pred_region
      %148 = dma.done [#allocation6], 128
    $region49: #{_run_pallas.1} parent=1 // pred_fallthru
      _
    // Predicated region
    $region50: #{_run_pallas.1} parent=1 // pred_check
      _
    $region51: #{_run_pallas.1} parent=1 // pred_check_branch
      %150 = sbr.rel (0) target = $region53
    $region52: #{_run_pallas.1} parent=1 // pred_region
      %152 = dma.done [#allocation9], 256
    $region53: #{_run_pallas.1} parent=1 // pred_fallthru
      _
    // Predicated region
    $region54: #{_run_pallas.1} parent=1 // pred_check
      _
    $region55: #{_run_pallas.1} parent=1 // pred_check_branch
      %154 = sbr.rel (0) target = $region57
    $region56: #{_run_pallas.1} parent=1 // pred_region
      %156 = dma.done [#allocation9], 256
    $region57: #{_run_pallas.1} parent=1 // pred_fallthru
      _
    // Predicated region
    $region58: #{_run_pallas.1} parent=1 // pred_check
      _
    $region59: #{_run_pallas.1} parent=1 // pred_check_branch
      %158 = sbr.rel (0) target = $region61
    $region60: #{_run_pallas.1} parent=1 // pred_region
      %160 = dma.done [#allocation12], 1024
    $region61: #{_run_pallas.1} parent=1 // pred_fallthru
      _
    // Predicated region
    $region62: #{_run_pallas.1} parent=1 // pred_check
      _
    $region63: #{_run_pallas.1} parent=1 // pred_check_branch
      %162 = sbr.rel (0) target = $region65
    $region64: #{_run_pallas.1} parent=1 // pred_region
      %164 = dma.done [#allocation12], 1024
    $region65: #{_run_pallas.1} parent=1 // pred_fallthru
      _
    // Predicated region
    $region66: #{_run_pallas.1} parent=1 // pred_check
      _
    $region67: #{_run_pallas.1} parent=1 // pred_check_branch
      %166 = sbr.rel (0) target = $region69
    $region68: #{_run_pallas.1} parent=1 // pred_region
      %168 = dma.done [#allocation15], 1024
    $region69: #{_run_pallas.1} parent=1 // pred_fallthru
      _
    // Predicated region
    $region70: #{_run_pallas.1} parent=1 // pred_check
      _
    $region71: #{_run_pallas.1} parent=1 // pred_check_branch
      %170 = sbr.rel (0) target = $region73
    $region72: #{_run_pallas.1} parent=1 // pred_region
      %172 = dma.done [#allocation15], 1024
    $region73: #{_run_pallas.1} parent=1 // pred_fallthru
      _
    %v174 = vld [vmem:[#allocation2] sm:$0xf]
    %v175 = vld [vmem:[#allocation2 + $0x4] sm:$0xf]
    %v176 = vld [vmem:[#allocation11] sm:$0xf]
    %v177 = vld [vmem:[#allocation11 + $0x4] sm:$0xf]
    %v178 = vld [vmem:[#allocation11 + $0x8] sm:$0xf]
    %v179 = vld [vmem:[#allocation11 + $0xc] sm:$0xf]
    %v180 = vld [vmem:[#allocation11 + $0x10] sm:$0xf]
    %v181 = vld [vmem:[#allocation11 + $0x14] sm:$0xf]
    %v182 = vld [vmem:[#allocation11 + $0x18] sm:$0xf]
    %v183 = vld [vmem:[#allocation11 + $0x1c] sm:$0xf]
    %v184 = vld [vmem:[#allocation11 + $0x20] sm:$0xf]
    %v185 = vld [vmem:[#allocation11 + $0x24] sm:$0xf]
    %v186 = vld [vmem:[#allocation11 + $0x28] sm:$0xf]
    %v187 = vld [vmem:[#allocation11 + $0x2c] sm:$0xf]
    %v188 = vld [vmem:[#allocation11 + $0x30] sm:$0xf]
    %v189 = vld [vmem:[#allocation11 + $0x34] sm:$0xf]
    %v190 = vld [vmem:[#allocation11 + $0x38] sm:$0xf]
    %v191 = vld [vmem:[#allocation11 + $0x3c] sm:$0xf]
    %v194 = vunpack.c.l.b16 %v174
    %v195 = vunpack.c.l.b16 %v175
    %v196 = vpack.c.b16 %v195, %v194
    %v214 = vunpack.c.l.b16 %v176
    %v215 = vunpack.c.l.b16 %v177
    %v216 = vunpack.c.l.b16 %v178
    %v217 = vunpack.c.l.b16 %v179
    %v218 = vunpack.c.l.b16 %v180
    %v219 = vunpack.c.l.b16 %v181
    %v220 = vunpack.c.l.b16 %v182
    %v221 = vunpack.c.l.b16 %v183
    %v222 = vunpack.c.l.b16 %v184
    %v223 = vunpack.c.l.b16 %v185
    %v224 = vunpack.c.l.b16 %v186
    %v225 = vunpack.c.l.b16 %v187
    %v226 = vunpack.c.l.b16 %v188
    %v227 = vunpack.c.l.b16 %v189
    %v228 = vunpack.c.l.b16 %v190
    %v229 = vunpack.c.l.b16 %v191
    %v230 = vpack.c.b16 %v215, %v214
    %v231 = vpack.c.b16 %v217, %v216
    %v232 = vpack.c.b16 %v219, %v218
    %v233 = vpack.c.b16 %v221, %v220
    %v234 = vpack.c.b16 %v223, %v222
    %v235 = vpack.c.b16 %v225, %v224
    %v236 = vpack.c.b16 %v227, %v226
    %v237 = vpack.c.b16 %v229, %v228
    %246 = vmatpush.bf16.msra.mxu0 %v237
    %247 = vmatpush.bf16.msra.mxu0 %v236
    %248 = vmatpush.bf16.msra.mxu0 %v235
    %249 = vmatpush.bf16.msra.mxu0 %v234
    %250 = vmatpush.bf16.msra.mxu0 %v233
    %251 = vmatpush.bf16.msra.mxu0 %v232
    %252 = vmatpush.bf16.msra.mxu0 %v231
    %253 = vmatpush.bf16.msra.mxu0 %v230
    %254 = vmatmul.bf16.gmra.mxu0 %v196
    %v255 = vpop.f32.mrf.mxu0
    %v256 = vadd.f32 0.0, %v255
    %v257 = vpop.f32.mrf.mxu0
    %v258 = vadd.f32 0.0, %v257
    %259 = vdwg.mxu0
    %v260 = vld [vmem:[#allocation5] sm:$0xf]
    %v261 = vld [vmem:[#allocation5 + $0x4] sm:$0xf]
    %v262 = vld [vmem:[#allocation13] sm:$0xf]
    %v263 = vld [vmem:[#allocation13 + $0x4] sm:$0xf]
    %v264 = vld [vmem:[#allocation13 + $0x8] sm:$0xf]
    %v265 = vld [vmem:[#allocation13 + $0xc] sm:$0xf]
    %v266 = vld [vmem:[#allocation13 + $0x10] sm:$0xf]
    %v267 = vld [vmem:[#allocation13 + $0x14] sm:$0xf]
    %v268 = vld [vmem:[#allocation13 + $0x18] sm:$0xf]
    %v269 = vld [vmem:[#allocation13 + $0x1c] sm:$0xf]
    %v270 = vld [vmem:[#allocation13 + $0x20] sm:$0xf]
    %v271 = vld [vmem:[#allocation13 + $0x24] sm:$0xf]
    %v272 = vld [vmem:[#allocation13 + $0x28] sm:$0xf]
    %v273 = vld [vmem:[#allocation13 + $0x2c] sm:$0xf]
    %v274 = vld [vmem:[#allocation13 + $0x30] sm:$0xf]
    %v275 = vld [vmem:[#allocation13 + $0x34] sm:$0xf]
    %v276 = vld [vmem:[#allocation13 + $0x38] sm:$0xf]
    %v277 = vld [vmem:[#allocation13 + $0x3c] sm:$0xf]
    %v280 = vunpack.c.l.b16 %v260
    %v281 = vunpack.c.l.b16 %v261
    %v282 = vpack.c.b16 %v281, %v280
    %v300 = vunpack.c.l.b16 %v262
    %v301 = vunpack.c.l.b16 %v263
    %v302 = vunpack.c.l.b16 %v264
    %v303 = vunpack.c.l.b16 %v265
    %v304 = vunpack.c.l.b16 %v266
    %v305 = vunpack.c.l.b16 %v267
    %v306 = vunpack.c.l.b16 %v268
    %v307 = vunpack.c.l.b16 %v269
    %v308 = vunpack.c.l.b16 %v270
    %v309 = vunpack.c.l.b16 %v271
    %v310 = vunpack.c.l.b16 %v272
    %v311 = vunpack.c.l.b16 %v273
    %v312 = vunpack.c.l.b16 %v274
    %v313 = vunpack.c.l.b16 %v275
    %v314 = vunpack.c.l.b16 %v276
    %v315 = vunpack.c.l.b16 %v277
    %v316 = vpack.c.b16 %v301, %v300
    %v317 = vpack.c.b16 %v303, %v302
    %v318 = vpack.c.b16 %v305, %v304
    %v319 = vpack.c.b16 %v307, %v306
    %v320 = vpack.c.b16 %v309, %v308
    %v321 = vpack.c.b16 %v311, %v310
    %v322 = vpack.c.b16 %v313, %v312
    %v323 = vpack.c.b16 %v315, %v314
    %332 = vmatpush.bf16.msra.mxu0 %v323
    %333 = vmatpush.bf16.msra.mxu0 %v322
    %334 = vmatpush.bf16.msra.mxu0 %v321
    %335 = vmatpush.bf16.msra.mxu0 %v320
    %336 = vmatpush.bf16.msra.mxu0 %v319
    %337 = vmatpush.bf16.msra.mxu0 %v318
    %338 = vmatpush.bf16.msra.mxu0 %v317
    %339 = vmatpush.bf16.msra.mxu0 %v316
    %340 = vmatmul.bf16.gmra.mxu0 %v282
    %v341 = vpop.f32.mrf.mxu0
    %v342 = vadd.f32 0.0, %v341
    %v343 = vpop.f32.mrf.mxu0
    %v344 = vadd.f32 0.0, %v343
    %345 = vdwg.mxu0
    %v346 = vld [vmem:[#allocation7] sm:$0xf]
    %v347 = vld [vmem:[#allocation7 + $0x4] sm:$0xf]
    %v348 = vunpack.c.l.bf16 %v346
    %v349 = vunpack.c.l.bf16 %v347
    %v350 = vld [vmem:[#allocation14] sm:$0xf]
    %v351 = vld [vmem:[#allocation14 + $0x4] sm:$0xf]
    %v352 = vld [vmem:[#allocation14 + $0x8] sm:$0xf]
    %v353 = vld [vmem:[#allocation14 + $0xc] sm:$0xf]
    %v354 = vld [vmem:[#allocation14 + $0x10] sm:$0xf]
    %v355 = vld [vmem:[#allocation14 + $0x14] sm:$0xf]
    %v356 = vld [vmem:[#allocation14 + $0x18] sm:$0xf]
    %v357 = vld [vmem:[#allocation14 + $0x1c] sm:$0xf]
    %v358 = vld [vmem:[#allocation14 + $0x20] sm:$0xf]
    %v359 = vld [vmem:[#allocation14 + $0x24] sm:$0xf]
    %v360 = vld [vmem:[#allocation14 + $0x28] sm:$0xf]
    %v361 = vld [vmem:[#allocation14 + $0x2c] sm:$0xf]
    %v362 = vld [vmem:[#allocation14 + $0x30] sm:$0xf]
    %v363 = vld [vmem:[#allocation14 + $0x34] sm:$0xf]
    %v364 = vld [vmem:[#allocation14 + $0x38] sm:$0xf]
    %v365 = vld [vmem:[#allocation14 + $0x3c] sm:$0xf]
    %v368 = vunpack.c.l.b16 %v346
    %v369 = vunpack.c.l.b16 %v347
    %v370 = vpack.c.b16 %v369, %v368
    %v388 = vunpack.c.l.b16 %v350
    %v389 = vunpack.c.l.b16 %v351
    %v390 = vunpack.c.l.b16 %v352
    %v391 = vunpack.c.l.b16 %v353
    %v392 = vunpack.c.l.b16 %v354
    %v393 = vunpack.c.l.b16 %v355
    %v394 = vunpack.c.l.b16 %v356
    %v395 = vunpack.c.l.b16 %v357
    %v396 = vunpack.c.l.b16 %v358
    %v397 = vunpack.c.l.b16 %v359
    %v398 = vunpack.c.l.b16 %v360
    %v399 = vunpack.c.l.b16 %v361
    %v400 = vunpack.c.l.b16 %v362
    %v401 = vunpack.c.l.b16 %v363
    %v402 = vunpack.c.l.b16 %v364
    %v403 = vunpack.c.l.b16 %v365
    %v404 = vpack.c.b16 %v389, %v388
    %v405 = vpack.c.b16 %v391, %v390
    %v406 = vpack.c.b16 %v393, %v392
    %v407 = vpack.c.b16 %v395, %v394
    %v408 = vpack.c.b16 %v397, %v396
    %v409 = vpack.c.b16 %v399, %v398
    %v410 = vpack.c.b16 %v401, %v400
    %v411 = vpack.c.b16 %v403, %v402
    %420 = vmatpush.bf16.msra.mxu0 %v411
    %421 = vmatpush.bf16.msra.mxu0 %v410
    %422 = vmatpush.bf16.msra.mxu0 %v409
    %423 = vmatpush.bf16.msra.mxu0 %v408
    %424 = vmatpush.bf16.msra.mxu0 %v407
    %425 = vmatpush.bf16.msra.mxu0 %v406
    %426 = vmatpush.bf16.msra.mxu0 %v405
    %427 = vmatpush.bf16.msra.mxu0 %v404
    %428 = vmatmul.bf16.gmra.mxu0 %v370
    %v429 = vpop.f32.mrf.mxu0
    %v430 = vadd.f32 0.0, %v429
    %v431 = vpop.f32.mrf.mxu0
    %v432 = vadd.f32 0.0, %v431
    %433 = vdwg.mxu0
    %v434 = vpack.c.bf16 %v258, %v256
    %v435 = vpack.c.bf16 %v344, %v342
    %v436 = vpack.c.bf16 %v432, %v430
    %437 = vmatpush.bf16.xpose.msra.mxu0 0
    %438 = vmatpush.bf16.xpose.msra.mxu0 0
    %439 = vmatpush.bf16.xpose.msra.mxu0 0
    %440 = vmatpush.bf16.xpose.msra.mxu0 0
    %441 = vmatpush.bf16.xpose.msra.mxu0 0
    %442 = vmatpush.bf16.xpose.msra.mxu0 0
    %443 = vmatpush.bf16.xpose.msra.mxu0 0
    %444 = vmatpush.bf16.xpose.msra.mxu0 %v434
    %445 = vmatmul.bf16.gmra.mxu0 %v436
    %v446 = vpop.f32.mrf.mxu0
    %v447 = vadd.f32 0.0, %v446
    %v448 = vpop.f32.mrf.mxu0
    %v449 = vadd.f32 0.0, %v448
    %450 = vdwg.mxu0
    %v451 = vmul.f32 %v447, 0.088388346
    %v452 = vmul.f32 %v449, 0.088388346
    %v453 = vld [vmem:[#allocation8] sm:$0xff]
    %v454 = vld [vmem:[#allocation8 + $0x8] sm:$0xff]
    %v455 = vadd.f32 %v451, %v453
    %v456 = vadd.f32 %v452, %v454
    %vm457 = vcmask 130048
    %v458 = vsel %vm457, %v455, -inf
    %459 = vmax.xlane.f32.xlu0 %v458
    %v460 = vpop.xlane.xlu0 %459
    %v461 = vsel %vm457, %v456, -inf
    %462 = vmax.xlane.f32.xlu0 %v461
    %v463 = vpop.xlane.xlu0 %462
    %v464 = vsub.f32 %v455, %v460
    %v465 = vsub.f32 %v456, %v463
    %v466 = vmul.f32 %v464, 1.442695
    %v467 = vpow.pop %v466
    %v468 = vmul.f32 %v465, 1.442695
    %v469 = vpow.pop %v468
    %v470 = vsel %vm457, %v467, 0.0
    %471 = vadd.xlane.f32.xlu0 %v470
    %v472 = vpop.xlane.xlu0 %471
    %v473 = vsel %vm457, %v469, 0.0
    %474 = vadd.xlane.f32.xlu0 %v473
    %v475 = vpop.xlane.xlu0 %474
    %v476 = vrcp.pop %v472
    %v477 = vrcp.pop %v475
    %v478 = vmul.f32 %v467, %v476
    %v479 = vmul.f32 %v469, %v477
    %v480 = vpack.c.bf16 %v479, %v478
    %v482 = vsel %vm457, %v480, 0
    %484 = vmatpush.bf16.msra.mxu0 0
    %485 = vmatpush.bf16.msra.mxu0 0
    %486 = vmatpush.bf16.msra.mxu0 0
    %487 = vmatpush.bf16.msra.mxu0 0
    %488 = vmatpush.bf16.msra.mxu0 0
    %489 = vmatpush.bf16.msra.mxu0 0
    %490 = vmatpush.bf16.msra.mxu0 0
    %491 = vmatpush.bf16.msra.mxu0 %v434
    %492 = vmatmul.bf16.gmra.mxu0 %v482
    %v493 = vpop.f32.mrf.mxu0
    %v494 = vadd.f32 0.0, %v493
    %v495 = vpop.f32.mrf.mxu0
    %v496 = vadd.f32 0.0, %v495
    %497 = vdwg.mxu0
    %498 = vmatpush.bf16.xpose.msra.mxu0 0
    %499 = vmatpush.bf16.xpose.msra.mxu0 0
    %500 = vmatpush.bf16.xpose.msra.mxu0 0
    %501 = vmatpush.bf16.xpose.msra.mxu0 0
    %502 = vmatpush.bf16.xpose.msra.mxu0 0
    %503 = vmatpush.bf16.xpose.msra.mxu0 0
    %504 = vmatpush.bf16.xpose.msra.mxu0 0
    %505 = vmatpush.bf16.xpose.msra.mxu0 %v435
    %506 = vmatmul.bf16.gmra.mxu0 %v436
    %v507 = vpop.f32.mrf.mxu0
    %v508 = vadd.f32 0.0, %v507
    %v509 = vpop.f32.mrf.mxu0
    %v510 = vadd.f32 0.0, %v509
    %511 = vdwg.mxu0
    %v512 = vmul.f32 %v508, 0.088388346
    %v513 = vmul.f32 %v510, 0.088388346
    %v514 = vld [vmem:[#allocation10] sm:$0xff]
    %v515 = vld [vmem:[#allocation10 + $0x8] sm:$0xff]
    %v516 = vadd.f32 %v512, %v514
    %v517 = vadd.f32 %v513, %v515
    %v518 = vsel %vm457, %v516, -inf
    %519 = vmax.xlane.f32.xlu0 %v518
    %v520 = vpop.xlane.xlu0 %519
    %v521 = vsel %vm457, %v517, -inf
    %522 = vmax.xlane.f32.xlu0 %v521
    %v523 = vpop.xlane.xlu0 %522
    %v524 = vsub.f32 %v516, %v520
    %v525 = vsub.f32 %v517, %v523
    %v526 = vmul.f32 %v524, 1.442695
    %v527 = vpow.pop %v526
    %v528 = vmul.f32 %v525, 1.442695
    %v529 = vpow.pop %v528
    %v530 = vsel %vm457, %v527, 0.0
    %531 = vadd.xlane.f32.xlu0 %v530
    %v532 = vpop.xlane.xlu0 %531
    %v533 = vsel %vm457, %v529, 0.0
    %534 = vadd.xlane.f32.xlu0 %v533
    %v535 = vpop.xlane.xlu0 %534
    %v536 = vrcp.pop %v532
    %v537 = vrcp.pop %v535
    %v538 = vmul.f32 %v527, %v536
    %v539 = vmul.f32 %v529, %v537
    %v540 = vpack.c.bf16 %v539, %v538
    %v542 = vsel %vm457, %v540, 0
    %544 = vmatpush.bf16.msra.mxu0 0
    %545 = vmatpush.bf16.msra.mxu0 0
    %546 = vmatpush.bf16.msra.mxu0 0
    %547 = vmatpush.bf16.msra.mxu0 0
    %548 = vmatpush.bf16.msra.mxu0 0
    %549 = vmatpush.bf16.msra.mxu0 0
    %550 = vmatpush.bf16.msra.mxu0 0
    %551 = vmatpush.bf16.msra.mxu0 %v435
    %552 = vmatmul.bf16.gmra.mxu0 %v542
    %v553 = vpop.f32.mrf.mxu0
    %v554 = vadd.f32 0.0, %v553
    %v555 = vpop.f32.mrf.mxu0
    %v556 = vadd.f32 0.0, %v555
    %557 = vdwg.mxu0
    %v558 = vadd.f32 %v348, %v494
    %v559 = vadd.f32 %v349, %v496
    %v560 = vadd.f32 %v558, %v554
    %v561 = vadd.f32 %v559, %v556
    %v562 = vpack.c.bf16 %v561, %v560
    %v563 = vld [vmem:[#allocation16] sm:$0xf]
    %v564 = vld [vmem:[#allocation16 + $0x4] sm:$0xf]
    %v565 = vld [vmem:[#allocation16 + $0x8] sm:$0xf]
    %v566 = vld [vmem:[#allocation16 + $0xc] sm:$0xf]
    %v567 = vld [vmem:[#allocation16 + $0x10] sm:$0xf]
    %v568 = vld [vmem:[#allocation16 + $0x14] sm:$0xf]
    %v569 = vld [vmem:[#allocation16 + $0x18] sm:$0xf]
    %v570 = vld [vmem:[#allocation16 + $0x1c] sm:$0xf]
    %v571 = vld [vmem:[#allocation16 + $0x20] sm:$0xf]
    %v572 = vld [vmem:[#allocation16 + $0x24] sm:$0xf]
    %v573 = vld [vmem:[#allocation16 + $0x28] sm:$0xf]
    %v574 = vld [vmem:[#allocation16 + $0x2c] sm:$0xf]
    %v575 = vld [vmem:[#allocation16 + $0x30] sm:$0xf]
    %v576 = vld [vmem:[#allocation16 + $0x34] sm:$0xf]
    %v577 = vld [vmem:[#allocation16 + $0x38] sm:$0xf]
    %v578 = vld [vmem:[#allocation16 + $0x3c] sm:$0xf]
    %v595 = vunpack.c.l.b16 %v563
    %v596 = vunpack.c.l.b16 %v564
    %v597 = vunpack.c.l.b16 %v565
    %v598 = vunpack.c.l.b16 %v566
    %v599 = vunpack.c.l.b16 %v567
    %v600 = vunpack.c.l.b16 %v568
    %v601 = vunpack.c.l.b16 %v569
    %v602 = vunpack.c.l.b16 %v570
    %v603 = vunpack.c.l.b16 %v571
    %v604 = vunpack.c.l.b16 %v572
    %v605 = vunpack.c.l.b16 %v573
    %v606 = vunpack.c.l.b16 %v574
    %v607 = vunpack.c.l.b16 %v575
    %v608 = vunpack.c.l.b16 %v576
    %v609 = vunpack.c.l.b16 %v577
    %v610 = vunpack.c.l.b16 %v578
    %v611 = vpack.c.b16 %v596, %v595
    %v612 = vpack.c.b16 %v598, %v597
    %v613 = vpack.c.b16 %v600, %v599
    %v614 = vpack.c.b16 %v602, %v601
    %v615 = vpack.c.b16 %v604, %v603
    %v616 = vpack.c.b16 %v606, %v605
    %v617 = vpack.c.b16 %v608, %v607
    %v618 = vpack.c.b16 %v610, %v609
    %627 = vmatpush.bf16.msra.mxu0 %v618
    %628 = vmatpush.bf16.msra.mxu0 %v617
    %629 = vmatpush.bf16.msra.mxu0 %v616
    %630 = vmatpush.bf16.msra.mxu0 %v615
    %631 = vmatpush.bf16.msra.mxu0 %v614
    %632 = vmatpush.bf16.msra.mxu0 %v613
    %633 = vmatpush.bf16.msra.mxu0 %v612
    %634 = vmatpush.bf16.msra.mxu0 %v611
    %635 = vmatmul.bf16.gmra.mxu0 %v562
    %v636 = vpop.f32.mrf.mxu0
    %v637 = vadd.f32 0.0, %v636
    %v638 = vpop.f32.mrf.mxu0
    %v639 = vadd.f32 0.0, %v638
    %640 = vdwg.mxu0
    %641 = vst [vmem:[#allocation17] sm:$0xff] %v637
    %642 = vst [vmem:[#allocation17 + $0x8] sm:$0xff] %v639
    // Predicated region
    $region74: #{_run_pallas.1} parent=1 // pred_check
      _
    $region75: #{_run_pallas.1} parent=1 // pred_check_branch
      %644 = sbr.rel (0) target = $region77
    $region76: #{_run_pallas.1} parent=1 // pred_region
      %646 = vsyncadd [#allocation4], 0
      %s647 = sshll.u32 [#allocation17], 4
      %s648 = int_to_ptr.vmem [resolvable:$true] %s647
      %s649 = sshll.u32 %s9, 4
      %s650 = int_to_ptr.hbm [resolvable:$true] %s649
      %655 = dma.vmem_to_hbm [thread:$0]  %s648, 256, %s650, [#allocation4], 128, 128, 8
    $region77: #{_run_pallas.1} parent=1 // pred_fallthru
      _
    // Predicated region
    $region78: #{_run_pallas.1} parent=1 // pred_check
      _
    $region79: #{_run_pallas.1} parent=1 // pred_check_branch
      %657 = sbr.rel (0) target = $region81
    $region80: #{_run_pallas.1} parent=1 // pred_region
      %659 = dma.done [#allocation4], 256
    $region81: #{_run_pallas.1} parent=1 // pred_fallthru
      _
    %660 = vsyncpa [#allocation3], 1
    %661 = vsyncpa [#allocation6], 1
    %662 = vsyncpa [#allocation9], 1
    %663 = vsyncpa [#allocation12], 1
    %664 = vsyncpa [#allocation15], 1
    %665 = vsyncpa [#allocation4], 1

</llo_original>
